<compile_context>
chip_gen: v7x
topology: tpu7x:2x2x1
jax: 0.10.0
libtpu: 0.0.40
codegen_flags: <defaults>
</compile_context>

<pallas_src>
import functools

import jax
import jax.numpy as jnp
from jax import lax
from jax.experimental import pallas as pl
from jax.experimental.pallas import tpu as pltpu

LANE = 128
SUBLANE = 8
_SMALL_FANIN = 16   # below this, layer 0 runs on the VPU (no lane padding of x)


def _round_up(n: int, m: int) -> int:
    return ((n + m - 1) // m) * m


def _fused_mlp_kernel(*refs, num_layers: int, din: int, dout: int,
                      first_layer_matmul: bool):
    """(Linear -> Tanh)^(L-1) -> Linear, fully fused in one kernel body.

    refs = (x_ref, w0_ref, b0_ref, ..., w{L-1}_ref, b{L-1}_ref, o_ref)
      x_ref : (TB, Din_stored)            -- lanes unpadded when Din is tiny
      wi    : (Din_stored_i, pdim_{i+1})  -- lane-dense (128-mult) outputs
      bi    : (1, pdim_{i+1})
      o_ref : (TB, Dout)                  -- narrow HBM output
    """
    x_ref = refs[0]
    o_ref = refs[-1]
    x = x_ref[...]

    # ---- layer 0 -----------------------------------------------------------
    w0 = refs[1][...]
    b0 = refs[2][...]
    if first_layer_matmul:
        h = jnp.dot(x, w0, preferred_element_type=jnp.float32) + b0
    else:
        # Tiny fan-in (Din=1 for a PINN): a K=1 MXU matmul would force the
        # streamed input to be lane-padded 1->128.  Do VPU broadcast
        # outer-products instead: (TB,1) * (1,H) per input feature.
        h = x[:, 0:1] * w0[0:1, :] + b0
        for d in range(1, din):
            h = h + x[:, d:d + 1] * w0[d:d + 1, :]
    if num_layers > 1:
        h = jnp.tanh(h)

    # ---- hidden / output layers (lane-dense MXU matmuls) --------------------
    for i in range(1, num_layers):
        w = refs[1 + 2 * i][...]
        b = refs[2 + 2 * i][...]
        h = jnp.dot(h, w, preferred_element_type=jnp.float32) + b
        if i < num_layers - 1:
            h = jnp.tanh(h)          # EUP slot; overlaps with the next MXU pass

    # Store only the real output columns (narrow masked vst; HBM stays narrow).
    if h.shape[1] != dout:
        h = h[:, :dout]
    o_ref[...] = h.astype(o_ref.dtype)


def prepare_params(params, din: int, *, lane_mult: int = LANE):
    """Zero-pad weights/biases ONCE to lane-dense shapes (call outside jit).

    params: list of (w, b) with w stored as (fan_in, fan_out).
    Returns (padded_params, meta) with static layout info.
    Note: lane_mult=256 can be used on v6e/v7x for hidden widths >=256; 128 is
    right for this 32-wide net and for v5e.
    """
    num_layers = len(params)
    dims = [din] + [int(w.shape[1]) for (w, _) in params]
    first_layer_matmul = din > _SMALL_FANIN
    in0 = _round_up(din, lane_mult) if first_layer_matmul else din
    pdims = [in0] + [_round_up(d, lane_mult) for d in dims[1:]]

    padded = []
    for i, (w, b) in enumerate(params):
        w = jnp.asarray(w, jnp.float32)
        b = jnp.asarray(b, jnp.float32).reshape(1, -1)
        wp = jnp.pad(w, ((0, pdims[i] - w.shape[0]),
                         (0, pdims[i + 1] - w.shape[1])))
        bp = jnp.pad(b, ((0, 0), (0, pdims[i + 1] - b.shape[1])))
        padded.append((wp, bp))

    meta = dict(num_layers=num_layers, din=din, dout=dims[-1],
                in0=in0, pdims=tuple(pdims),
                first_layer_matmul=first_layer_matmul)
    return padded, meta


def mlp_forward_pallas(x, padded_params, meta, *, tb_max: int = 1024):
    """Forward pass of NeuralNetwork(hlayers) as ONE fused pallas_call.

    x: (B, Din) f32.  padded_params/meta: from prepare_params (padding already
    done once, outside the per-step jit).
    """
    B = x.shape[0]
    num_layers = meta["num_layers"]
    din, dout = meta["din"], meta["dout"]
    in0 = meta["in0"]
    first_layer_matmul = meta["first_layer_matmul"]

    x = x.astype(jnp.float32)
    if first_layer_matmul and in0 != din:
        x = jnp.pad(x, ((0, 0), (0, in0 - din)))

    # Batch tiling: cdiv-style so tail waste is bounded by a few rows, not a
    # whole tile.  >=2 tiles when B is large enough so v7x's second TensorCore
    # gets work (no effect on single-TC v5e/v6e).
    num_tiles = pl.cdiv(B, tb_max)
    if num_tiles == 1 and B >= 256:
        num_tiles = 2
    TB = _round_up(pl.cdiv(B, num_tiles), SUBLANE)
    Bp = num_tiles * TB
    if Bp != B:
        x = jnp.pad(x, ((0, Bp - B), (0, 0)))

    flat = []
    for (wp, bp) in padded_params:
        flat += [wp, bp]

    kernel = functools.partial(
        _fused_mlp_kernel, num_layers=num_layers, din=din, dout=dout,
        first_layer_matmul=first_layer_matmul)
    out_shape = jax.ShapeDtypeStruct((Bp, dout), jnp.float32)

    if num_tiles == 1:
        # Single tile: no grid -> zero per-step overhead, everything resident.
        out = pl.pallas_call(kernel, out_shape=out_shape)(x, *flat)
    else:
        # All weights stay VMEM-resident (constant index_map).  Watch the v7x
        # budget (64 MiB physical / 32 MiB scoped default) for scaled-up nets.
        resident_bytes = sum(int(w.size + b.size) for (w, b) in padded_params) * 4
        vmem_limit = None
        if resident_bytes > 24 * 1024 * 1024:
            # TODO(synk): for very wide nets, stream weights over a layer grid
            # axis with Buffered(2) BlockSpecs instead of raising the limit.
            vmem_limit = min(2 * resident_bytes + (1 << 23), 100 * 1024 * 1024)

        in_specs = [pl.BlockSpec((TB, x.shape[1]), lambda i: (i, 0))]
        for (wp, bp) in padded_params:
            in_specs.append(pl.BlockSpec(wp.shape, lambda i: (0, 0)))
            in_specs.append(pl.BlockSpec(bp.shape, lambda i: (0, 0)))

        out = pl.pallas_call(
            kernel,
            out_shape=out_shape,
            grid=(num_tiles,),
            in_specs=in_specs,
            out_specs=pl.BlockSpec((TB, dout), lambda i: (i, 0)),
            compiler_params=pltpu.CompilerParams(
                dimension_semantics=("parallel",),
                vmem_limit_bytes=vmem_limit),
        )(x, *flat)

    return out[:B]


def init_params(hlayers, key):
    """Match the PyTorch module: Xavier-normal weights (stored as (in, out)),
    PyTorch-default uniform(-1/sqrt(fan_in), 1/sqrt(fan_in)) biases."""
    params = []
    for i in range(len(hlayers) - 1):
        fan_in, fan_out = hlayers[i], hlayers[i + 1]
        key, kw, kb = jax.random.split(key, 3)
        std = (2.0 / (fan_in + fan_out)) ** 0.5
        w = std * jax.random.normal(kw, (fan_in, fan_out), dtype=jnp.float32)
        bound = 1.0 / (fan_in ** 0.5)
        b = jax.random.uniform(kb, (fan_out,), minval=-bound, maxval=bound,
                               dtype=jnp.float32)
        params.append((w, b))
    return params


def neural_network_ref(x, params):
    """Pure-JAX reference: (Linear -> Tanh)* then Linear."""
    n = len(params)
    h = x
    for i, (w, b) in enumerate(params):
        h = jnp.dot(h, w, precision=lax.Precision.HIGHEST) + b
        if i < n - 1:
            h = jnp.tanh(h)
    return h


if __name__ == "__main__":
    # Mirror the spec: dom_samples=100, x = linspace(-1, 1)[:, None],
    # hlayers=[1, 32, 32, 1] (two tanh hidden layers, linear output).
    dom_samples = 100
    hlayers = [1, 32, 32, 1]

    key = jax.random.PRNGKey(0)
    params = init_params(hlayers, key)
    x = jnp.linspace(-1.0, 1.0, dom_samples, dtype=jnp.float32).reshape(-1, 1)

    # Pad weights/biases ONCE, outside the jitted per-step forward.
    padded_params, meta = prepare_params(params, din=hlayers[0])

    forward = jax.jit(functools.partial(mlp_forward_pallas, meta=meta))
    out = jax.block_until_ready(forward(x, padded_params))

    ref = neural_network_ref(x, params)
    assert out.shape == (dom_samples, hlayers[-1]), out.shape
    assert jnp.allclose(out, ref, atol=1e-4, rtol=1e-4), \
        float(jnp.max(jnp.abs(out - ref)))

    print("KERNEL_OK")
</pallas_src>

<mosaic_0001>
module attributes {stable_mosaic.version = 11 : i64} {
  func.func @_fused_mlp_kernel(%arg0: memref<104x1xf32, #tpu.memory_space<vmem>>, %arg1: memref<1x128xf32, #tpu.memory_space<vmem>>, %arg2: memref<1x128xf32, #tpu.memory_space<vmem>>, %arg3: memref<128x128xf32, #tpu.memory_space<vmem>>, %arg4: memref<1x128xf32, #tpu.memory_space<vmem>>, %arg5: memref<128x128xf32, #tpu.memory_space<vmem>>, %arg6: memref<1x128xf32, #tpu.memory_space<vmem>>, %arg7: memref<104x1xf32, #tpu.memory_space<vmem>>) attributes {dimension_semantics = [], scalar_prefetch = 0 : i64, scratch_operands = 0 : i64, tpu.core_type = #tpu.core_type<tc>} {
    %c0 = arith.constant 0 : index
    %c0_0 = arith.constant 0 : index
    %0 = vector.load %arg0[%c0, %c0_0] : memref<104x1xf32, #tpu.memory_space<vmem>>, vector<104x1xf32>
    %c0_1 = arith.constant 0 : index
    %c0_2 = arith.constant 0 : index
    %1 = vector.load %arg1[%c0_1, %c0_2] : memref<1x128xf32, #tpu.memory_space<vmem>>, vector<1x128xf32>
    %c0_3 = arith.constant 0 : index
    %c0_4 = arith.constant 0 : index
    %2 = vector.load %arg2[%c0_3, %c0_4] : memref<1x128xf32, #tpu.memory_space<vmem>>, vector<1x128xf32>
    %3 = vector.broadcast %0 : vector<104x1xf32> to vector<104x128xf32>
    %4 = vector.broadcast %1 : vector<1x128xf32> to vector<104x128xf32>
    %5 = arith.mulf %3, %4 : vector<104x128xf32>
    %6 = vector.broadcast %2 : vector<1x128xf32> to vector<104x128xf32>
    %7 = arith.addf %5, %6 : vector<104x128xf32>
    %8 = math.tanh %7 : vector<104x128xf32>
    %c0_5 = arith.constant 0 : index
    %c0_6 = arith.constant 0 : index
    %9 = vector.load %arg3[%c0_5, %c0_6] : memref<128x128xf32, #tpu.memory_space<vmem>>, vector<128x128xf32>
    %c0_7 = arith.constant 0 : index
    %c0_8 = arith.constant 0 : index
    %10 = vector.load %arg4[%c0_7, %c0_8] : memref<1x128xf32, #tpu.memory_space<vmem>>, vector<1x128xf32>
    %cst = arith.constant dense<0.000000e+00> : vector<104x128xf32>
    %11 = tpu.matmul %8, %9, %cst {dimension_numbers = #tpu.dot_dimension_numbers<[1], [0], [0], [1], [0, 0, 1, 1], [], []>} : vector<104x128xf32>, vector<128x128xf32>, vector<104x128xf32> -> vector<104x128xf32>
    %12 = vector.broadcast %10 : vector<1x128xf32> to vector<104x128xf32>
    %13 = arith.addf %11, %12 : vector<104x128xf32>
    %14 = math.tanh %13 : vector<104x128xf32>
    %c0_9 = arith.constant 0 : index
    %c0_10 = arith.constant 0 : index
    %15 = vector.load %arg5[%c0_9, %c0_10] : memref<128x128xf32, #tpu.memory_space<vmem>>, vector<128x128xf32>
    %c0_11 = arith.constant 0 : index
    %c0_12 = arith.constant 0 : index
    %16 = vector.load %arg6[%c0_11, %c0_12] : memref<1x128xf32, #tpu.memory_space<vmem>>, vector<1x128xf32>
    %cst_13 = arith.constant dense<0.000000e+00> : vector<104x128xf32>
    %17 = tpu.matmul %14, %15, %cst_13 {dimension_numbers = #tpu.dot_dimension_numbers<[1], [0], [0], [1], [0, 0, 1, 1], [], []>} : vector<104x128xf32>, vector<128x128xf32>, vector<104x128xf32> -> vector<104x128xf32>
    %18 = vector.broadcast %16 : vector<1x128xf32> to vector<104x128xf32>
    %19 = arith.addf %17, %18 : vector<104x128xf32>
    %20 = vector.extract_strided_slice %19 {offsets = [0, 0], sizes = [104, 1], strides = [1, 1]} : vector<104x128xf32> to vector<104x1xf32>
    %c0_14 = arith.constant 0 : index
    %c0_15 = arith.constant 0 : index
    %21 = vector.load %arg7[%c0_14, %c0_15] : memref<104x1xf32, #tpu.memory_space<vmem>>, vector<104x1xf32>
    tpu.vector_store %arg7[%c0_14, %c0_15], %20 {strides = array<i32>} : memref<104x1xf32, #tpu.memory_space<vmem>>, vector<104x1xf32>,
    return
  }
}

</mosaic_0001>

<llo_original>
// kernel: mlp_forward_pallas.1
$region0: #{mlp_forward_pallas.1}
  #allocation0 [shape = 'u32[]', space=smem, size = 0x4, offset = 0x4, fixed_abs, tag = 'smem constant byte address 0x4 - core index']
  #allocation1 [shape = 'u32[144,128]{1,0:T(1,128)}', space=vmem, size = 0x12000, scoped, tag = 'internal scratch']
  %s0 = inlined_call_operand.vmem [shape: f32[104,1], index: 0, kind: input, shape index: {}]
  %s1 = inlined_call_operand.vmem [shape: f32[1,128], index: 1, kind: input, shape index: {}]
  %s2 = inlined_call_operand.vmem [shape: f32[1,128], index: 2, kind: input, shape index: {}]
  %s3 = inlined_call_operand.vmem [shape: f32[128,128], index: 3, kind: input, shape index: {}]
  %s4 = inlined_call_operand.vmem [shape: f32[1,128], index: 4, kind: input, shape index: {}]
  %s5 = inlined_call_operand.vmem [shape: f32[128,128], index: 5, kind: input, shape index: {}]
  %s6 = inlined_call_operand.vmem [shape: f32[1,128], index: 6, kind: input, shape index: {}]
  %s7 = inlined_call_operand.vmem [shape: f32[104,1], index: 7, kind: output, shape index: {}]
  %s8 = sld [smem:[#allocation0]]
  $region38: #{mlp_forward_pallas.1} parent=0
    _
  %s10 = ssub.s32 1, %s8
  %s11 = scalar_select 0, %s10, %s8
  // Predicated region
  $region2: #{mlp_forward_pallas.1} parent=0 // pred_check
    _
  $region3: #{mlp_forward_pallas.1} parent=0 // pred_check_branch
    %13 = sbr.rel (0) target = $region5
  $region4: #{mlp_forward_pallas.1} parent=0 // pred_region
    _
  $region5: #{mlp_forward_pallas.1} parent=0 // pred_fallthru
    _
  // Predicated region
  $region6: #{mlp_forward_pallas.1} parent=0 // pred_check
    _
  $region7: #{mlp_forward_pallas.1} parent=0 // pred_check_branch
    %15 = sbr.rel (0) target = $region9
  $region8: #{mlp_forward_pallas.1} parent=0 // pred_region
    _
  $region9: #{mlp_forward_pallas.1} parent=0 // pred_fallthru
    _
  // Predicated region
  $region10: #{mlp_forward_pallas.1} parent=0 // pred_check
    _
  $region11: #{mlp_forward_pallas.1} parent=0 // pred_check_branch
    %17 = sbr.rel (0) target = $region13
  $region12: #{mlp_forward_pallas.1} parent=0 // pred_region
    _
  $region13: #{mlp_forward_pallas.1} parent=0 // pred_fallthru
    _
  // Predicated region
  $region14: #{mlp_forward_pallas.1} parent=0 // pred_check
    _
  $region15: #{mlp_forward_pallas.1} parent=0 // pred_check_branch
    %19 = sbr.rel (0) target = $region17
  $region16: #{mlp_forward_pallas.1} parent=0 // pred_region
    _
  $region17: #{mlp_forward_pallas.1} parent=0 // pred_fallthru
    _
  // Predicated region
  $region18: #{mlp_forward_pallas.1} parent=0 // pred_check
    _
  $region19: #{mlp_forward_pallas.1} parent=0 // pred_check_branch
    %21 = sbr.rel (0) target = $region21
  $region20: #{mlp_forward_pallas.1} parent=0 // pred_region
    _
  $region21: #{mlp_forward_pallas.1} parent=0 // pred_fallthru
    _
  // Predicated region
  $region22: #{mlp_forward_pallas.1} parent=0 // pred_check
    _
  $region23: #{mlp_forward_pallas.1} parent=0 // pred_check_branch
    %23 = sbr.rel (0) target = $region25
  $region24: #{mlp_forward_pallas.1} parent=0 // pred_region
    _
  $region25: #{mlp_forward_pallas.1} parent=0 // pred_fallthru
    _
  // Predicated region
  $region26: #{mlp_forward_pallas.1} parent=0 // pred_check
    _
  $region27: #{mlp_forward_pallas.1} parent=0 // pred_check_branch
    %25 = sbr.rel (0) target = $region29
  $region28: #{mlp_forward_pallas.1} parent=0 // pred_region
    _
  $region29: #{mlp_forward_pallas.1} parent=0 // pred_fallthru
    _
  %v26 = vld [vmem:[%s0] sm:$0xff]
  %v27 = vld [vmem:[%s0 + $0x8] sm:$0xff]
  %v28 = vld [vmem:[%s0 + $0x10] sm:$0xff]
  %v29 = vld [vmem:[%s0 + $0x18] sm:$0xff]
  %v30 = vld [vmem:[%s0 + $0x20] sm:$0xff]
  %v31 = vld [vmem:[%s0 + $0x28] sm:$0xff]
  %v32 = vld [vmem:[%s0 + $0x30] sm:$0xff]
  %v33 = vld [vmem:[%s0 + $0x38] sm:$0xff]
  %v34 = vld [vmem:[%s0 + $0x40] sm:$0xff]
  %v35 = vld [vmem:[%s0 + $0x48] sm:$0xff]
  %v36 = vld [vmem:[%s0 + $0x50] sm:$0xff]
  %v37 = vld [vmem:[%s0 + $0x58] sm:$0xff]
  %v38 = vld [vmem:[%s0 + $0x60] sm:$0xff]
  %v39 = vld [vmem:[%s1] sm:$0x1]
  %v40 = vld [vmem:[%s2] sm:$0x1]
  %42 = vset.pattern.permute.xlu0 0
  %43 = vperm.xlu0 %42, %v26
  %v44 = vpop.permute.xlu0 %43
  %47 = vset.pattern.permute.xlu0 0
  %48 = vperm.xlu0 %47, %v27
  %v49 = vpop.permute.xlu0 %48
  %52 = vset.pattern.permute.xlu0 0
  %53 = vperm.xlu0 %52, %v28
  %v54 = vpop.permute.xlu0 %53
  %57 = vset.pattern.permute.xlu0 0
  %58 = vperm.xlu0 %57, %v29
  %v59 = vpop.permute.xlu0 %58
  %62 = vset.pattern.permute.xlu0 0
  %63 = vperm.xlu0 %62, %v30
  %v64 = vpop.permute.xlu0 %63
  %67 = vset.pattern.permute.xlu0 0
  %68 = vperm.xlu0 %67, %v31
  %v69 = vpop.permute.xlu0 %68
  %72 = vset.pattern.permute.xlu0 0
  %73 = vperm.xlu0 %72, %v32
  %v74 = vpop.permute.xlu0 %73
  %77 = vset.pattern.permute.xlu0 0
  %78 = vperm.xlu0 %77, %v33
  %v79 = vpop.permute.xlu0 %78
  %82 = vset.pattern.permute.xlu0 0
  %83 = vperm.xlu0 %82, %v34
  %v84 = vpop.permute.xlu0 %83
  %87 = vset.pattern.permute.xlu0 0
  %88 = vperm.xlu0 %87, %v35
  %v89 = vpop.permute.xlu0 %88
  %92 = vset.pattern.permute.xlu0 0
  %93 = vperm.xlu0 %92, %v36
  %v94 = vpop.permute.xlu0 %93
  %97 = vset.pattern.permute.xlu0 0
  %98 = vperm.xlu0 %97, %v37
  %v99 = vpop.permute.xlu0 %98
  %102 = vset.pattern.permute.xlu0 0
  %103 = vperm.xlu0 %102, %v38
  %v104 = vpop.permute.xlu0 %103
  %v107 = vlaneseq
  %v108 = vshrl.u32 %v107, 7
  %v109 = vsub.s32 0, %v108
  %v110 = vrot.slane %v39, %v109
  %v112 = vmul.f32 %v44, %v110
  %v113 = vmul.f32 %v49, %v110
  %v114 = vmul.f32 %v54, %v110
  %v115 = vmul.f32 %v59, %v110
  %v116 = vmul.f32 %v64, %v110
  %v117 = vmul.f32 %v69, %v110
  %v118 = vmul.f32 %v74, %v110
  %v119 = vmul.f32 %v79, %v110
  %v120 = vmul.f32 %v84, %v110
  %v121 = vmul.f32 %v89, %v110
  %v122 = vmul.f32 %v94, %v110
  %v123 = vmul.f32 %v99, %v110
  %v124 = vmul.f32 %v104, %v110
  %v126 = vlaneseq
  %v127 = vshrl.u32 %v126, 7
  %v128 = vsub.s32 0, %v127
  %v129 = vrot.slane %v40, %v128
  %v131 = vadd.f32 %v112, %v129
  %v132 = vadd.f32 %v113, %v129
  %v133 = vadd.f32 %v114, %v129
  %v134 = vadd.f32 %v115, %v129
  %v135 = vadd.f32 %v116, %v129
  %v136 = vadd.f32 %v117, %v129
  %v137 = vadd.f32 %v118, %v129
  %v138 = vadd.f32 %v119, %v129
  %v139 = vadd.f32 %v120, %v129
  %v140 = vadd.f32 %v121, %v129
  %v141 = vadd.f32 %v122, %v129
  %v142 = vadd.f32 %v123, %v129
  %v143 = vadd.f32 %v124, %v129
  %v144 = vtanh.pop %v131
  %v145 = vtanh.pop %v132
  %v146 = vtanh.pop %v133
  %v147 = vtanh.pop %v134
  %v148 = vtanh.pop %v135
  %v149 = vtanh.pop %v136
  %v150 = vtanh.pop %v137
  %v151 = vtanh.pop %v138
  %v152 = vtanh.pop %v139
  %v153 = vtanh.pop %v140
  %v154 = vtanh.pop %v141
  %v155 = vtanh.pop %v142
  %v156 = vtanh.pop %v143
  %v157 = vld [vmem:[%s3] sm:$0xff]
  %v158 = vld [vmem:[%s3 + $0x8] sm:$0xff]
  %v159 = vld [vmem:[%s3 + $0x10] sm:$0xff]
  %v160 = vld [vmem:[%s3 + $0x18] sm:$0xff]
  %v161 = vld [vmem:[%s3 + $0x20] sm:$0xff]
  %v162 = vld [vmem:[%s3 + $0x28] sm:$0xff]
  %v163 = vld [vmem:[%s3 + $0x30] sm:$0xff]
  %v164 = vld [vmem:[%s3 + $0x38] sm:$0xff]
  %v165 = vld [vmem:[%s3 + $0x40] sm:$0xff]
  %v166 = vld [vmem:[%s3 + $0x48] sm:$0xff]
  %v167 = vld [vmem:[%s3 + $0x50] sm:$0xff]
  %v168 = vld [vmem:[%s3 + $0x58] sm:$0xff]
  %v169 = vld [vmem:[%s3 + $0x60] sm:$0xff]
  %v170 = vld [vmem:[%s3 + $0x68] sm:$0xff]
  %v171 = vld [vmem:[%s3 + $0x70] sm:$0xff]
  %v172 = vld [vmem:[%s3 + $0x78] sm:$0xff]
  %v173 = vld [vmem:[%s4] sm:$0x1]
  %v175 = vlaneseq
  %v176 = vshrl.u32 %v175, 7
  %v177 = vsub.s32 0, %v176
  %v178 = vrot.slane %v173, %v177
  %180 = vmatprep.subr.mxu0 0.0
  %181 = vmatpush1.msra.mxu0 %v157
  %182 = vmatprep.subr.mxu0 0.0
  %183 = vmatpush1.msra.mxu0 %v158
  %184 = vmatprep.subr.mxu0 0.0
  %185 = vmatpush1.msra.mxu0 %v159
  %186 = vmatprep.subr.mxu0 0.0
  %187 = vmatpush1.msra.mxu0 %v160
  %188 = vmatprep.subr.mxu0 0.0
  %189 = vmatpush1.msra.mxu0 %v161
  %190 = vmatprep.subr.mxu0 0.0
  %191 = vmatpush1.msra.mxu0 %v162
  %192 = vmatprep.subr.mxu0 0.0
  %193 = vmatpush1.msra.mxu0 %v163
  %194 = vmatprep.subr.mxu0 0.0
  %195 = vmatpush1.msra.mxu0 %v164
  %196 = vmatprep.subr.mxu0 0.0
  %197 = vmatpush1.msra.mxu0 %v165
  %198 = vmatprep.subr.mxu0 0.0
  %199 = vmatpush1.msra.mxu0 %v166
  %200 = vmatprep.subr.mxu0 0.0
  %201 = vmatpush1.msra.mxu0 %v167
  %202 = vmatprep.subr.mxu0 0.0
  %203 = vmatpush1.msra.mxu0 %v168
  %204 = vmatprep.subr.mxu0 0.0
  %205 = vmatpush1.msra.mxu0 %v169
  %206 = vmatprep.subr.mxu0 0.0
  %207 = vmatpush1.msra.mxu0 %v170
  %208 = vmatprep.subr.mxu0 0.0
  %209 = vmatpush1.msra.mxu0 %v171
  %210 = vmatprep.subr.mxu0 0.0
  %211 = vmatpush1.msra.mxu0 %v172
  %212 = vmatprep.subr.mxu0 0.0
  %213 = vmatpush1.msra.mxu0 0.0
  %214 = vmatprep.subr.mxu0 0.0
  %215 = vmatpush1.msra.mxu0 0.0
  %216 = vmatprep.subr.mxu0 0.0
  %217 = vmatpush1.msra.mxu0 0.0
  %218 = vmatprep.subr.mxu0 0.0
  %219 = vmatpush1.msra.mxu0 0.0
  %220 = vmatprep.subr.mxu0 0.0
  %221 = vmatpush1.msra.mxu0 0.0
  %222 = vmatprep.subr.mxu0 0.0
  %223 = vmatpush1.msra.mxu0 0.0
  %224 = vmatprep.subr.mxu0 0.0
  %225 = vmatpush1.msra.mxu0 0.0
  %226 = vmatprep.subr.mxu0 0.0
  %227 = vmatpush1.msra.mxu0 0.0
  %228 = vmatprep.subr.mxu0 0.0
  %229 = vmatpush1.msra.mxu0 0.0
  %230 = vmatprep.subr.mxu0 0.0
  %231 = vmatpush1.msra.mxu0 0.0
  %232 = vmatprep.subr.mxu0 0.0
  %233 = vmatpush1.msra.mxu0 0.0
  %234 = vmatprep.subr.mxu0 0.0
  %235 = vmatpush1.msra.mxu0 0.0
  %236 = vmatprep.subr.mxu0 0.0
  %237 = vmatpush1.msra.mxu0 0.0
  %238 = vmatprep.subr.mxu0 0.0
  %239 = vmatpush1.msra.mxu0 0.0
  %240 = vmatprep.subr.mxu0 0.0
  %241 = vmatpush1.msra.mxu0 0.0
  %242 = vmatprep.subr.mxu0 0.0
  %243 = vmatpush1.msra.mxu0 0.0
  %244 = vmatprep.mubr.f32.mxu0 0.0
  %245 = vmatmul.mubr.f32.gmra.mrb[0].mxu0 %v144
  %v246 = vpop.f32.mrb[0].mxu0
  %v247 = vadd.f32 %v178, %v246
  %v248 = vpop.f32.mrb[0].mxu0
  %249 = vmatprep.mubr.f32.mxu0 0.0
  %250 = vmatmul.mubr.f32.gmra.mrb[0].mxu0 %v145
  %v251 = vpop.f32.mrb[0].mxu0
  %v252 = vadd.f32 %v178, %v251
  %v253 = vpop.f32.mrb[0].mxu0
  %254 = vmatprep.mubr.f32.mxu0 0.0
  %255 = vmatmul.mubr.f32.gmra.mrb[0].mxu0 %v146
  %v256 = vpop.f32.mrb[0].mxu0
  %v257 = vadd.f32 %v178, %v256
  %v258 = vpop.f32.mrb[0].mxu0
  %259 = vmatprep.mubr.f32.mxu0 0.0
  %260 = vmatmul.mubr.f32.gmra.mrb[0].mxu0 %v147
  %v261 = vpop.f32.mrb[0].mxu0
  %v262 = vadd.f32 %v178, %v261
  %v263 = vpop.f32.mrb[0].mxu0
  %264 = vmatprep.mubr.f32.mxu0 0.0
  %265 = vmatmul.mubr.f32.gmra.mrb[0].mxu0 %v148
  %v266 = vpop.f32.mrb[0].mxu0
  %v267 = vadd.f32 %v178, %v266
  %v268 = vpop.f32.mrb[0].mxu0
  %269 = vmatprep.mubr.f32.mxu0 0.0
  %270 = vmatmul.mubr.f32.gmra.mrb[0].mxu0 %v149
  %v271 = vpop.f32.mrb[0].mxu0
  %v272 = vadd.f32 %v178, %v271
  %v273 = vpop.f32.mrb[0].mxu0
  %274 = vmatprep.mubr.f32.mxu0 0.0
  %275 = vmatmul.mubr.f32.gmra.mrb[0].mxu0 %v150
  %v276 = vpop.f32.mrb[0].mxu0
  %v277 = vadd.f32 %v178, %v276
  %v278 = vpop.f32.mrb[0].mxu0
  %279 = vmatprep.mubr.f32.mxu0 0.0
  %280 = vmatmul.mubr.f32.gmra.mrb[0].mxu0 %v151
  %v281 = vpop.f32.mrb[0].mxu0
  %v282 = vadd.f32 %v178, %v281
  %v283 = vpop.f32.mrb[0].mxu0
  %284 = vmatprep.mubr.f32.mxu0 0.0
  %285 = vmatmul.mubr.f32.gmra.mrb[0].mxu0 %v152
  %v286 = vpop.f32.mrb[0].mxu0
  %v287 = vadd.f32 %v178, %v286
  %v288 = vpop.f32.mrb[0].mxu0
  %289 = vmatprep.mubr.f32.mxu0 0.0
  %290 = vmatmul.mubr.f32.gmra.mrb[0].mxu0 %v153
  %v291 = vpop.f32.mrb[0].mxu0
  %v292 = vadd.f32 %v178, %v291
  %v293 = vpop.f32.mrb[0].mxu0
  %294 = vmatprep.mubr.f32.mxu0 0.0
  %295 = vmatmul.mubr.f32.gmra.mrb[0].mxu0 %v154
  %v296 = vpop.f32.mrb[0].mxu0
  %v297 = vadd.f32 %v178, %v296
  %v298 = vpop.f32.mrb[0].mxu0
  %299 = vmatprep.mubr.f32.mxu0 0.0
  %300 = vmatmul.mubr.f32.gmra.mrb[0].mxu0 %v155
  %v301 = vpop.f32.mrb[0].mxu0
  %v302 = vadd.f32 %v178, %v301
  %v303 = vpop.f32.mrb[0].mxu0
  %304 = vmatprep.mubr.f32.mxu0 0.0
  %305 = vmatmul.mubr.f32.gmra.mrb[0].mxu0 %v156
  %v306 = vpop.f32.mrb[0].mxu0
  %v307 = vadd.f32 %v178, %v306
  %v308 = vpop.f32.mrb[0].mxu0
  %309 = vdwg.mxu0
  %v310 = vtanh.pop %v247
  %v311 = vtanh.pop %v252
  %v312 = vtanh.pop %v257
  %v313 = vtanh.pop %v262
  %v314 = vtanh.pop %v267
  %v315 = vtanh.pop %v272
  %v316 = vtanh.pop %v277
  %v317 = vtanh.pop %v282
  %v318 = vtanh.pop %v287
  %v319 = vtanh.pop %v292
  %v320 = vtanh.pop %v297
  %v321 = vtanh.pop %v302
  %v322 = vtanh.pop %v307
  %v323 = vld [vmem:[%s5] sm:$0xff]
  %v324 = vld [vmem:[%s5 + $0x8] sm:$0xff]
  %v325 = vld [vmem:[%s5 + $0x10] sm:$0xff]
  %v326 = vld [vmem:[%s5 + $0x18] sm:$0xff]
  %v327 = vld [vmem:[%s5 + $0x20] sm:$0xff]
  %v328 = vld [vmem:[%s5 + $0x28] sm:$0xff]
  %v329 = vld [vmem:[%s5 + $0x30] sm:$0xff]
  %v330 = vld [vmem:[%s5 + $0x38] sm:$0xff]
  %v331 = vld [vmem:[%s5 + $0x40] sm:$0xff]
  %v332 = vld [vmem:[%s5 + $0x48] sm:$0xff]
  %v333 = vld [vmem:[%s5 + $0x50] sm:$0xff]
  %v334 = vld [vmem:[%s5 + $0x58] sm:$0xff]
  %v335 = vld [vmem:[%s5 + $0x60] sm:$0xff]
  %v336 = vld [vmem:[%s5 + $0x68] sm:$0xff]
  %v337 = vld [vmem:[%s5 + $0x70] sm:$0xff]
  %v338 = vld [vmem:[%s5 + $0x78] sm:$0xff]
  %v339 = vld [vmem:[%s6] sm:$0x1]
  %v341 = vlaneseq
  %v342 = vshrl.u32 %v341, 7
  %v343 = vsub.s32 0, %v342
  %v344 = vrot.slane %v339, %v343
  %346 = vmatprep.subr.mxu0 0.0
  %347 = vmatpush1.msra.mxu0 %v323
  %348 = vmatprep.subr.mxu0 0.0
  %349 = vmatpush1.msra.mxu0 %v324
  %350 = vmatprep.subr.mxu0 0.0
  %351 = vmatpush1.msra.mxu0 %v325
  %352 = vmatprep.subr.mxu0 0.0
  %353 = vmatpush1.msra.mxu0 %v326
  %354 = vmatprep.subr.mxu0 0.0
  %355 = vmatpush1.msra.mxu0 %v327
  %356 = vmatprep.subr.mxu0 0.0
  %357 = vmatpush1.msra.mxu0 %v328
  %358 = vmatprep.subr.mxu0 0.0
  %359 = vmatpush1.msra.mxu0 %v329
  %360 = vmatprep.subr.mxu0 0.0
  %361 = vmatpush1.msra.mxu0 %v330
  %362 = vmatprep.subr.mxu0 0.0
  %363 = vmatpush1.msra.mxu0 %v331
  %364 = vmatprep.subr.mxu0 0.0
  %365 = vmatpush1.msra.mxu0 %v332
  %366 = vmatprep.subr.mxu0 0.0
  %367 = vmatpush1.msra.mxu0 %v333
  %368 = vmatprep.subr.mxu0 0.0
  %369 = vmatpush1.msra.mxu0 %v334
  %370 = vmatprep.subr.mxu0 0.0
  %371 = vmatpush1.msra.mxu0 %v335
  %372 = vmatprep.subr.mxu0 0.0
  %373 = vmatpush1.msra.mxu0 %v336
  %374 = vmatprep.subr.mxu0 0.0
  %375 = vmatpush1.msra.mxu0 %v337
  %376 = vmatprep.subr.mxu0 0.0
  %377 = vmatpush1.msra.mxu0 %v338
  %378 = vmatprep.subr.mxu0 0.0
  %379 = vmatpush1.msra.mxu0 0.0
  %380 = vmatprep.subr.mxu0 0.0
  %381 = vmatpush1.msra.mxu0 0.0
  %382 = vmatprep.subr.mxu0 0.0
  %383 = vmatpush1.msra.mxu0 0.0
  %384 = vmatprep.subr.mxu0 0.0
  %385 = vmatpush1.msra.mxu0 0.0
  %386 = vmatprep.subr.mxu0 0.0
  %387 = vmatpush1.msra.mxu0 0.0
  %388 = vmatprep.subr.mxu0 0.0
  %389 = vmatpush1.msra.mxu0 0.0
  %390 = vmatprep.subr.mxu0 0.0
  %391 = vmatpush1.msra.mxu0 0.0
  %392 = vmatprep.subr.mxu0 0.0
  %393 = vmatpush1.msra.mxu0 0.0
  %394 = vmatprep.subr.mxu0 0.0
  %395 = vmatpush1.msra.mxu0 0.0
  %396 = vmatprep.subr.mxu0 0.0
  %397 = vmatpush1.msra.mxu0 0.0
  %398 = vmatprep.subr.mxu0 0.0
  %399 = vmatpush1.msra.mxu0 0.0
  %400 = vmatprep.subr.mxu0 0.0
  %401 = vmatpush1.msra.mxu0 0.0
  %402 = vmatprep.subr.mxu0 0.0
  %403 = vmatpush1.msra.mxu0 0.0
  %404 = vmatprep.subr.mxu0 0.0
  %405 = vmatpush1.msra.mxu0 0.0
  %406 = vmatprep.subr.mxu0 0.0
  %407 = vmatpush1.msra.mxu0 0.0
  %408 = vmatprep.subr.mxu0 0.0
  %409 = vmatpush1.msra.mxu0 0.0
  %410 = vmatprep.mubr.f32.mxu0 0.0
  %411 = vmatmul.mubr.f32.gmra.mrb[0].mxu0 %v310
  %v412 = vpop.f32.mrb[0].mxu0
  %v413 = vadd.f32 %v344, %v412
  %v414 = vpop.f32.mrb[0].mxu0
  %415 = vmatprep.mubr.f32.mxu0 0.0
  %416 = vmatmul.mubr.f32.gmra.mrb[0].mxu0 %v311
  %v417 = vpop.f32.mrb[0].mxu0
  %v418 = vadd.f32 %v344, %v417
  %v419 = vpop.f32.mrb[0].mxu0
  %420 = vmatprep.mubr.f32.mxu0 0.0
  %421 = vmatmul.mubr.f32.gmra.mrb[0].mxu0 %v312
  %v422 = vpop.f32.mrb[0].mxu0
  %v423 = vadd.f32 %v344, %v422
  %v424 = vpop.f32.mrb[0].mxu0
  %425 = vmatprep.mubr.f32.mxu0 0.0
  %426 = vmatmul.mubr.f32.gmra.mrb[0].mxu0 %v313
  %v427 = vpop.f32.mrb[0].mxu0
  %v428 = vadd.f32 %v344, %v427
  %v429 = vpop.f32.mrb[0].mxu0
  %430 = vmatprep.mubr.f32.mxu0 0.0
  %431 = vmatmul.mubr.f32.gmra.mrb[0].mxu0 %v314
  %v432 = vpop.f32.mrb[0].mxu0
  %v433 = vadd.f32 %v344, %v432
  %v434 = vpop.f32.mrb[0].mxu0
  %435 = vmatprep.mubr.f32.mxu0 0.0
  %436 = vmatmul.mubr.f32.gmra.mrb[0].mxu0 %v315
  %v437 = vpop.f32.mrb[0].mxu0
  %v438 = vadd.f32 %v344, %v437
  %v439 = vpop.f32.mrb[0].mxu0
  %440 = vmatprep.mubr.f32.mxu0 0.0
  %441 = vmatmul.mubr.f32.gmra.mrb[0].mxu0 %v316
  %v442 = vpop.f32.mrb[0].mxu0
  %v443 = vadd.f32 %v344, %v442
  %v444 = vpop.f32.mrb[0].mxu0
  %445 = vmatprep.mubr.f32.mxu0 0.0
  %446 = vmatmul.mubr.f32.gmra.mrb[0].mxu0 %v317
  %v447 = vpop.f32.mrb[0].mxu0
  %v448 = vadd.f32 %v344, %v447
  %v449 = vpop.f32.mrb[0].mxu0
  %450 = vmatprep.mubr.f32.mxu0 0.0
  %451 = vmatmul.mubr.f32.gmra.mrb[0].mxu0 %v318
  %v452 = vpop.f32.mrb[0].mxu0
  %v453 = vadd.f32 %v344, %v452
  %v454 = vpop.f32.mrb[0].mxu0
  %455 = vmatprep.mubr.f32.mxu0 0.0
  %456 = vmatmul.mubr.f32.gmra.mrb[0].mxu0 %v319
  %v457 = vpop.f32.mrb[0].mxu0
  %v458 = vadd.f32 %v344, %v457
  %v459 = vpop.f32.mrb[0].mxu0
  %460 = vmatprep.mubr.f32.mxu0 0.0
  %461 = vmatmul.mubr.f32.gmra.mrb[0].mxu0 %v320
  %v462 = vpop.f32.mrb[0].mxu0
  %v463 = vadd.f32 %v344, %v462
  %v464 = vpop.f32.mrb[0].mxu0
  %465 = vmatprep.mubr.f32.mxu0 0.0
  %466 = vmatmul.mubr.f32.gmra.mrb[0].mxu0 %v321
  %v467 = vpop.f32.mrb[0].mxu0
  %v468 = vadd.f32 %v344, %v467
  %v469 = vpop.f32.mrb[0].mxu0
  %470 = vmatprep.mubr.f32.mxu0 0.0
  %471 = vmatmul.mubr.f32.gmra.mrb[0].mxu0 %v322
  %v472 = vpop.f32.mrb[0].mxu0
  %v473 = vadd.f32 %v344, %v472
  %v474 = vpop.f32.mrb[0].mxu0
  %475 = vdwg.mxu0
  %vm476 = vcmask 7168
  %477 = vst.msk [vmem:[%s7] sm:$0xff] %vm476, %v413
  %478 = vst.msk [vmem:[%s7 + $0x8] sm:$0xff] %vm476, %v418
  %479 = vst.msk [vmem:[%s7 + $0x10] sm:$0xff] %vm476, %v423
  %480 = vst.msk [vmem:[%s7 + $0x18] sm:$0xff] %vm476, %v428
  %481 = vst.msk [vmem:[%s7 + $0x20] sm:$0xff] %vm476, %v433
  %482 = vst.msk [vmem:[%s7 + $0x28] sm:$0xff] %vm476, %v438
  %483 = vst.msk [vmem:[%s7 + $0x30] sm:$0xff] %vm476, %v443
  %484 = vst.msk [vmem:[%s7 + $0x38] sm:$0xff] %vm476, %v448
  %485 = vst.msk [vmem:[%s7 + $0x40] sm:$0xff] %vm476, %v453
  %486 = vst.msk [vmem:[%s7 + $0x48] sm:$0xff] %vm476, %v458
  %487 = vst.msk [vmem:[%s7 + $0x50] sm:$0xff] %vm476, %v463
  %488 = vst.msk [vmem:[%s7 + $0x58] sm:$0xff] %vm476, %v468
  %489 = vst.msk [vmem:[%s7 + $0x60] sm:$0xff] %vm476, %v473
  // Predicated region
  $region30: #{mlp_forward_pallas.1} parent=0 // pred_check
    _
  $region31: #{mlp_forward_pallas.1} parent=0 // pred_check_branch
    %491 = sbr.rel (0) target = $region33
  $region32: #{mlp_forward_pallas.1} parent=0 // pred_region
    _
  $region33: #{mlp_forward_pallas.1} parent=0 // pred_fallthru
    _
  // Predicated region
  $region34: #{mlp_forward_pallas.1} parent=0 // pred_check
    _
  $region35: #{mlp_forward_pallas.1} parent=0 // pred_check_branch
    %493 = sbr.rel (0) target = $region37
  $region36: #{mlp_forward_pallas.1} parent=0 // pred_region
    _
  $region37: #{mlp_forward_pallas.1} parent=0 // pred_fallthru
    _

</llo_original>
